<compile_context>
chip_gen: v7x
topology: tpu7x:2x2x1
jax: 0.10.0
libtpu: 0.0.40
codegen_flags: <defaults>
</compile_context>

<pallas_src>
import jax
import jax.numpy as jnp
from jax.experimental import pallas as pl
from jax.experimental.pallas import tpu as pltpu

IN_CHANNELS = 4
OUT_PER_CONV = 30
MAX_K = 7
MAX_PAD = MAX_K // 2  # pad once for the largest (7x7) kernel


def gradient_spe_kernel(p_ref, wt_ref, b_ref, o_ref):
    # p_ref : (1, K*K*Cin, H*W)   im2col patches for this batch element
    # wt_ref: (Cout, K*K*Cin)     fused transposed weight
    # b_ref : (Cout, 1)           fused bias
    # o_ref : (1, Cout, H*W)      lane-dense output (NCHW-compatible)
    acc = jnp.dot(wt_ref[...], p_ref[0], preferred_element_type=jnp.float32)
    o_ref[0] = jnp.maximum(acc + b_ref[...], 0.0).astype(o_ref.dtype)


def _fuse_params(params):
    """Zero-pad w3/w5 to 7x7 and concat as [w5 | w7 | w3] -> (90,196) + (90,1)."""
    w3, b3, w5, b5, w7, b7 = params

    def pad_to7(w, K):
        p = (MAX_K - K) // 2
        return jnp.pad(w, ((p, p), (p, p), (0, 0), (0, 0)))

    w_all = jnp.concatenate([pad_to7(w5, 5), w7, pad_to7(w3, 3)], axis=-1)
    cout = w_all.shape[-1]
    # (7,7,Cin,Cout) -> (K*K*Cin, Cout) with flat index (ky*7+kx)*Cin + c
    wt = w_all.reshape(MAX_K * MAX_K * IN_CHANNELS, cout).T  # (Cout, 196)
    b_all = jnp.concatenate(
        [b5.reshape(-1), b7.reshape(-1), b3.reshape(-1)]).reshape(cout, 1)
    return wt, b_all


def _im2col(x_nchw, H, W):
    """(N,Cin,H,W) -> (N, K*K*Cin, H*W), tap-major / channel-minor ordering."""
    N, Cin = x_nchw.shape[0], x_nchw.shape[1]
    x_pad = jnp.pad(
        x_nchw, ((0, 0), (0, 0), (MAX_PAD, MAX_PAD), (MAX_PAD, MAX_PAD)))
    taps = []
    for ky in range(MAX_K):
        for kx in range(MAX_K):
            taps.append(
                x_pad[:, :, ky:ky + H, kx:kx + W].reshape(N, Cin, H * W))
    return jnp.concatenate(taps, axis=1)  # (N, 196, H*W)


def gradient_spe_forward(x_nchw, params):
    """x_nchw: (N, Cin, H, W) float32 -> (N, 90, H, W) float32."""
    N, Cin, H, W = x_nchw.shape
    HW = H * W
    Cout = 3 * OUT_PER_CONV
    Kdim = MAX_K * MAX_K * Cin

    wt, b_all = _fuse_params(params)          # (90, 196), (90, 1)
    patches = _im2col(x_nchw, H, W)           # (N, 196, H*W)

    out = pl.pallas_call(
        gradient_spe_kernel,
        out_shape=jax.ShapeDtypeStruct((N, Cout, HW), jnp.float32),
        grid=(N,),
        in_specs=[
            pl.BlockSpec((1, Kdim, HW), lambda n: (n, 0, 0)),
            pl.BlockSpec((Cout, Kdim), lambda n: (0, 0)),
            pl.BlockSpec((Cout, 1), lambda n: (0, 0)),
        ],
        out_specs=pl.BlockSpec((1, Cout, HW), lambda n: (n, 0, 0)),
        compiler_params=pltpu.CompilerParams(
            dimension_semantics=("parallel",)),
    )(patches, wt, b_all)

    # (N, 90, H*W) -> (N, 90, H, W): pure reshape, no transpose needed.
    return out.reshape(N, Cout, H, W)


def init_params(key, in_channels):
    """Deterministic synthetic weights: HWIO layout (K, K, Cin, Cout), bias (1, Cout)."""
    ks = jax.random.split(key, 6)

    def conv_init(kw, kb, K):
        fan_in = in_channels * K * K
        bound = 1.0 / jnp.sqrt(fan_in)
        w = jax.random.uniform(kw, (K, K, in_channels, OUT_PER_CONV),
                               jnp.float32, -bound, bound)
        b = jax.random.uniform(kb, (1, OUT_PER_CONV), jnp.float32, -bound, bound)
        return w, b

    w3, b3 = conv_init(ks[0], ks[1], 3)
    w5, b5 = conv_init(ks[2], ks[3], 5)
    w7, b7 = conv_init(ks[4], ks[5], 7)
    return (w3, b3, w5, b5, w7, b7)


def _reference(x_nchw, params):
    """Pure-JAX reference of the PyTorch forward (for a correctness check)."""
    w3, b3, w5, b5, w7, b7 = params
    x = jnp.transpose(x_nchw, (0, 2, 3, 1))
    dn = ("NHWC", "HWIO", "NHWC")

    def conv(w, b, p):
        y = jax.lax.conv_general_dilated(x, w, (1, 1), [(p, p), (p, p)],
                                         dimension_numbers=dn)
        return y + b.reshape(1, 1, 1, -1)

    f5 = conv(w5, b5, 2)
    f7 = conv(w7, b7, 3)
    f3 = conv(w3, b3, 1)
    out = jnp.maximum(jnp.concatenate([f5, f7, f3], axis=-1), 0.0)
    return jnp.transpose(out, (0, 3, 1, 2))


if __name__ == "__main__":
    key = jax.random.PRNGKey(0)
    k_x, k_p = jax.random.split(key)

    N, Cin, H, W = 2, IN_CHANNELS, 16, 16
    x = jax.random.normal(k_x, (N, Cin, H, W), jnp.float32)
    params = init_params(k_p, Cin)

    out = jax.block_until_ready(gradient_spe_forward(x, params))
    ref = jax.block_until_ready(_reference(x, params))

    assert out.shape == (N, 3 * OUT_PER_CONV, H, W), out.shape
    assert jnp.allclose(out, ref, atol=1e-4, rtol=1e-4), float(
        jnp.max(jnp.abs(out - ref)))
    print("KERNEL_OK")
</pallas_src>

<mosaic_0001>
module attributes {stable_mosaic.version = 11 : i64} {
  func.func @gradient_spe_kernel(%arg0: i32, %arg1: memref<1x196x256xf32, #tpu.memory_space<vmem>>, %arg2: memref<90x196xf32, #tpu.memory_space<vmem>>, %arg3: memref<90x1xf32, #tpu.memory_space<vmem>>, %arg4: memref<1x90x256xf32, #tpu.memory_space<vmem>>) attributes {dimension_semantics = [#tpu.dimension_semantics<parallel>], iteration_bounds = array<i64: 2>, scalar_prefetch = 0 : i64, scratch_operands = 0 : i64, tpu.core_type = #tpu.core_type<tc>, window_params = [{transform_indices = @transform_0, window_bounds = array<i64: 1, 196, 256>}, {pipeline_mode = #tpu.pipeline_mode<synchronous>, transform_indices = @transform_1, window_bounds = array<i64: 90, 196>}, {pipeline_mode = #tpu.pipeline_mode<synchronous>, transform_indices = @transform_2, window_bounds = array<i64: 90, 1>}, {transform_indices = @transform_3, window_bounds = array<i64: 1, 90, 256>}]} {
    %c0 = arith.constant 0 : index
    %c0_0 = arith.constant 0 : index
    %0 = vector.load %arg2[%c0, %c0_0] : memref<90x196xf32, #tpu.memory_space<vmem>>, vector<90x196xf32>
    %c0_1 = arith.constant 0 : index
    %c0_2 = arith.constant 0 : index
    %c0_3 = arith.constant 0 : index
    %1 = vector.load %arg1[%c0_1, %c0_2, %c0_3] : memref<1x196x256xf32, #tpu.memory_space<vmem>>, vector<1x196x256xf32>
    %2 = vector.shape_cast %1 : vector<1x196x256xf32> to vector<196x256xf32>
    %cst = arith.constant dense<0.000000e+00> : vector<90x256xf32>
    %3 = tpu.matmul %0, %2, %cst {dimension_numbers = #tpu.dot_dimension_numbers<[1], [0], [0], [1], [0, 0, 1, 1], [], []>} : vector<90x196xf32>, vector<196x256xf32>, vector<90x256xf32> -> vector<90x256xf32>
    %c0_4 = arith.constant 0 : index
    %c0_5 = arith.constant 0 : index
    %4 = vector.load %arg3[%c0_4, %c0_5] : memref<90x1xf32, #tpu.memory_space<vmem>>, vector<90x1xf32>
    %5 = vector.broadcast %4 : vector<90x1xf32> to vector<90x256xf32>
    %6 = arith.addf %3, %5 : vector<90x256xf32>
    %cst_6 = arith.constant 0.000000e+00 : f32
    %7 = vector.broadcast %cst_6 : f32 to vector<90x256xf32>
    %8 = arith.maximumf %6, %7 : vector<90x256xf32>
    %c0_7 = arith.constant 0 : index
    %c0_8 = arith.constant 0 : index
    %c0_9 = arith.constant 0 : index
    %9 = vector.load %arg4[%c0_7, %c0_8, %c0_9] : memref<1x90x256xf32, #tpu.memory_space<vmem>>, vector<1x90x256xf32>
    %10 = vector.shape_cast %9 : vector<1x90x256xf32> to vector<90x256xf32>
    %11 = vector.shape_cast %8 : vector<90x256xf32> to vector<1x90x256xf32>
    tpu.vector_store %arg4[%c0_7, %c0_8, %c0_9], %11 {strides = array<i32>} : memref<1x90x256xf32, #tpu.memory_space<vmem>>, vector<1x90x256xf32>,
    return
  }
  func.func @transform_0(%arg0: i32) -> (i32, i32, i32) {
    %c0_i32 = arith.constant 0 : i32
    %c0_i32_0 = arith.constant 0 : i32
    %c0_i32_1 = arith.constant 0 : i32
    return %arg0, %c0_i32, %c0_i32_0 : i32, i32, i32
  }
  func.func @transform_1(%arg0: i32) -> (i32, i32) {
    %c0_i32 = arith.constant 0 : i32
    %c0_i32_0 = arith.constant 0 : i32
    %c0_i32_1 = arith.constant 0 : i32
    return %c0_i32, %c0_i32_0 : i32, i32
  }
  func.func @transform_2(%arg0: i32) -> (i32, i32) {
    %c0_i32 = arith.constant 0 : i32
    %c0_i32_0 = arith.constant 0 : i32
    %c0_i32_1 = arith.constant 0 : i32
    return %c0_i32, %c0_i32_0 : i32, i32
  }
  func.func @transform_3(%arg0: i32) -> (i32, i32, i32) {
    %c0_i32 = arith.constant 0 : i32
    %c0_i32_0 = arith.constant 0 : i32
    %c0_i32_1 = arith.constant 0 : i32
    return %arg0, %c0_i32, %c0_i32_0 : i32, i32, i32
  }
}

</mosaic_0001>

<llo_original>
// kernel: tpu_custom_call.1
$region0: #{tpu_custom_call.1}
  #allocation0 [shape = 'u32[]', space=smem, size = 0x4, offset = 0x4, fixed_abs, tag = 'smem constant byte address 0x4 - core index']
  #allocation1 [shape = 'u32[144,128]{1,0:T(1,128)}', space=vmem, size = 0x12000, scoped, tag = 'internal scratch']
  %s0 = inlined_call_operand.vmem [shape: f32[2,196,256], index: 0, kind: input, shape index: {}]
  %s1 = inlined_call_operand.vmem [shape: f32[90,196], index: 1, kind: input, shape index: {}]
  %s2 = inlined_call_operand.vmem [shape: f32[90,1], index: 2, kind: input, shape index: {}]
  %s3 = inlined_call_operand.vmem [shape: f32[2,90,256], index: 3, kind: output, shape index: {}]
  %s4 = sld [smem:[#allocation0]]
  $region45: #{tpu_custom_call.1} parent=0
    _
  %s6 = ssub.s32 1, %s4
  %s7 = scalar_select 0, %s6, %s4
  loop: start=0, step=1, limit=4
  $region2: #{tpu_custom_call.1} parent=0 // loop_pre_header
    _
  $region3: #{tpu_custom_call.1} parent=0 // loop_header
    %s9 = sphi 0, %s13
    %p10 = scmp.ge.s32.totalorder %s9, 4
    %s19 = sphi 0, %s21
    %s22 = sphi 0, %s19
    %s23 = sphi 0, %s22
    %s39 = sphi 0, %s23
    %s43 = sphi 0, %s43
    %s45 = sphi 0, %s43
    %s46 = sphi 0, %s45
    %s60 = sphi 0, %s46
    %s64 = sphi 0, %s64
    %s66 = sphi 0, %s64
    %s67 = sphi 0, %s66
    %s81 = sphi 0, %s67
    %s87 = sphi 0, %s89
    %s90 = sphi 0, %s87
    %s91 = sphi 0, %s90
    %s107 = sphi 0, %s91
  $region4: #{tpu_custom_call.1} parent=0 // loop_header_branch
    %12 = sbr.rel (%p10) target = $region8
  $region5: #{tpu_custom_call.1} parent=0 // loop_body
    %s14 = ssub.s32 %s9, 1
    %s15 = ssub.s32 %s9, 2
    %s16 = sadd.s32 %s9, 1
    %s17 = ssub.s32 %s9, %s16
    %p18 = scmp.eq.s32.totalorder %s17, 0
    %s20 = sadd.s32 %s19, 1
    %s21 = scalar_select %p18, %s19, %s20
    %p24 = pneg %p18
    %p25 = scmp.eq.s32.totalorder %s9, 1
    %p26 = por %p24, %p25
    %p27 = scmp.ne.s32.totalorder %s19, %s22
    %p28 = scmp.eq.s32.totalorder %s9, 0
    %p29 = por %p27, %p28
    %p30 = scmp.ne.s32.totalorder %s19, %s22
    %p31 = scmp.eq.s32.totalorder %s14, 1
    %p32 = por %p30, %p31
    %p33 = scmp.ne.s32.totalorder %s22, %s23
    %p34 = scmp.eq.s32.totalorder %s14, 0
    %p35 = por %p33, %p34
    %p36 = scmp.ne.s32.totalorder %s22, %s23
    %p37 = scmp.eq.s32.totalorder %s15, 1
    %p38 = por %p36, %p37
    %p40 = scmp.ne.s32.totalorder %s23, %s39
    %p41 = scmp.eq.s32.totalorder %s15, 0
    %p42 = por %p40, %p41
    %s44 = sadd.s32 %s43, 1
    %p47 = scmp.eq.s32.totalorder %s9, 1
    %p48 = scmp.ne.s32.totalorder %s43, %s45
    %p49 = scmp.eq.s32.totalorder %s9, 0
    %p50 = por %p48, %p49
    %p51 = scmp.ne.s32.totalorder %s43, %s45
    %p52 = scmp.eq.s32.totalorder %s14, 1
    %p53 = por %p51, %p52
    %p54 = scmp.ne.s32.totalorder %s45, %s46
    %p55 = scmp.eq.s32.totalorder %s14, 0
    %p56 = por %p54, %p55
    %p57 = scmp.ne.s32.totalorder %s45, %s46
    %p58 = scmp.eq.s32.totalorder %s15, 1
    %p59 = por %p57, %p58
    %p61 = scmp.ne.s32.totalorder %s46, %s60
    %p62 = scmp.eq.s32.totalorder %s15, 0
    %p63 = por %p61, %p62
    %s65 = sadd.s32 %s64, 1
    %p68 = scmp.eq.s32.totalorder %s9, 1
    %p69 = scmp.ne.s32.totalorder %s64, %s66
    %p70 = scmp.eq.s32.totalorder %s9, 0
    %p71 = por %p69, %p70
    %p72 = scmp.ne.s32.totalorder %s64, %s66
    %p73 = scmp.eq.s32.totalorder %s14, 1
    %p74 = por %p72, %p73
    %p75 = scmp.ne.s32.totalorder %s66, %s67
    %p76 = scmp.eq.s32.totalorder %s14, 0
    %p77 = por %p75, %p76
    %p78 = scmp.ne.s32.totalorder %s66, %s67
    %p79 = scmp.eq.s32.totalorder %s15, 1
    %p80 = por %p78, %p79
    %p82 = scmp.ne.s32.totalorder %s67, %s81
    %p83 = scmp.eq.s32.totalorder %s15, 0
    %p84 = por %p82, %p83
    %s85 = ssub.s32 %s9, %s16
    %p86 = scmp.eq.s32.totalorder %s85, 0
    %s88 = sadd.s32 %s87, 1
    %s89 = scalar_select %p86, %s87, %s88
    %p92 = pneg %p86
    %p93 = scmp.eq.s32.totalorder %s9, 1
    %p94 = por %p92, %p93
    %p95 = scmp.ne.s32.totalorder %s87, %s90
    %p96 = scmp.eq.s32.totalorder %s9, 0
    %p97 = por %p95, %p96
    %p98 = scmp.ne.s32.totalorder %s87, %s90
    %p99 = scmp.eq.s32.totalorder %s14, 1
    %p100 = por %p98, %p99
    %p101 = scmp.ne.s32.totalorder %s90, %s91
    %p102 = scmp.eq.s32.totalorder %s14, 0
    %p103 = por %p101, %p102
    %p104 = scmp.ne.s32.totalorder %s90, %s91
    %p105 = scmp.eq.s32.totalorder %s15, 1
    %p106 = por %p104, %p105
    %p108 = scmp.ne.s32.totalorder %s91, %s107
    %p109 = scmp.eq.s32.totalorder %s15, 0
    %p110 = por %p108, %p109
    %p111 = scmp.le.s32.totalorder 1, %s9
    %p112 = scmp.lt.s32.totalorder %s9, 3
    %p113 = pnand %p111, %p112
    %p114 = pneg %p113
    // Predicated region
    $region9: #{tpu_custom_call.1} parent=5 // pred_check
      _
    $region10: #{tpu_custom_call.1} parent=5 // pred_check_branch
      %116 = sbr.rel (%p113) target = $region12
    $region11: #{tpu_custom_call.1} parent=5 // pred_region
      %s117 = ssub.s32 %s9, 1
      // Predicated region
      $region13: #{tpu_custom_call.1} parent=11 // pred_check
        %p118 = pneg %p56
      $region14: #{tpu_custom_call.1} parent=11 // pred_check_branch
        %120 = sbr.rel (%p118) target = $region16
      $region15: #{tpu_custom_call.1} parent=11 // pred_region
        _
      $region16: #{tpu_custom_call.1} parent=11 // pred_fallthru
        _
      // Predicated region
      $region17: #{tpu_custom_call.1} parent=11 // pred_check
        %p121 = pneg %p77
      $region18: #{tpu_custom_call.1} parent=11 // pred_check_branch
        %123 = sbr.rel (%p121) target = $region20
      $region19: #{tpu_custom_call.1} parent=11 // pred_region
        _
      $region20: #{tpu_custom_call.1} parent=11 // pred_fallthru
        _
    $region12: #{tpu_custom_call.1} parent=5 // pred_fallthru
      _
    %p124 = scmp.lt.s32.totalorder %s9, 2
    // Predicated region
    $region21: #{tpu_custom_call.1} parent=5 // pred_check
      %p125 = pneg %p124
    $region22: #{tpu_custom_call.1} parent=5 // pred_check_branch
      %127 = sbr.rel (%p125) target = $region24
    $region23: #{tpu_custom_call.1} parent=5 // pred_region
      // Predicated region
      $region25: #{tpu_custom_call.1} parent=23 // pred_check
        %p128 = pneg %p29
      $region26: #{tpu_custom_call.1} parent=23 // pred_check_branch
        %130 = sbr.rel (%p128) target = $region28
      $region27: #{tpu_custom_call.1} parent=23 // pred_region
        %p131 = scmp.lt.s32.totalorder %s9, 1
        %s132 = scalar_select %p131, %s9, 1
        %s133 = smul.addr %s132, 50
        %s134 = smul.addr %s133, 8
        %s135 = scalar_lea.vmem %s0, %s134
      $region28: #{tpu_custom_call.1} parent=23 // pred_fallthru
        _
    $region24: #{tpu_custom_call.1} parent=5 // pred_fallthru
      _
    %p136 = scmp.le.s32.totalorder 1, %s9
    %p137 = scmp.lt.s32.totalorder %s9, 3
    %p138 = pnand %p136, %p137
    %p139 = pneg %p138
    // Predicated region
    $region29: #{tpu_custom_call.1} parent=5 // pred_check
      _
    $region30: #{tpu_custom_call.1} parent=5 // pred_check_branch
      %141 = sbr.rel (%p138) target = $region32
    $region31: #{tpu_custom_call.1} parent=5 // pred_region
      %s142 = ssub.s32 %s9, 1
      %p143 = scmp.lt.s32.totalorder %s14, 1
      %s144 = scalar_select %p143, %s14, 1
      %s145 = smul.addr %s144, 50
      %s146 = smul.addr %s145, 8
      %s147 = scalar_lea.vmem %s0, %s146
      %p148 = pneg %p35
      %p149 = pneg %p32
      %p150 = pneg %p56
      %p151 = pneg %p53
      %p152 = pneg %p77
      %p153 = pneg %p74
      %p154 = pneg %p103
      %p155 = pneg %p100
      %p156 = scmp.lt.s32.totalorder %s14, 1
      %s157 = scalar_select %p156, %s14, 1
      %s158 = smul.addr %s157, 24
      %s159 = smul.addr %s158, 8
      %s160 = scalar_lea.vmem %s3, %s159
      %p161 = scmp.lt.s32.totalorder %s14, 1
      %s162 = scalar_select %p161, %s14, 1
      %s163 = smul.addr %s162, 50
      %s164 = smul.addr %s163, 8
      %s165 = scalar_lea.vmem %s0, %s164
      %p166 = scmp.lt.s32.totalorder %s14, 1
      %s167 = scalar_select %p166, %s14, 1
      %s168 = smul.addr %s167, 24
      %s169 = smul.addr %s168, 8
      %s170 = scalar_lea.vmem %s3, %s169
      %v171 = vld [vmem:[%s1] sm:$0xff]
      %v172 = vld [vmem:[%s1 + $0x8] sm:$0xff]
      %v173 = vld [vmem:[%s1 + $0x10] sm:$0xff]
      %v174 = vld [vmem:[%s1 + $0x18] sm:$0xff]
      %v175 = vld [vmem:[%s1 + $0x20] sm:$0xff]
      %v176 = vld [vmem:[%s1 + $0x28] sm:$0xff]
      %v177 = vld [vmem:[%s1 + $0x30] sm:$0xff]
      %v178 = vld [vmem:[%s1 + $0x38] sm:$0xff]
      %v179 = vld [vmem:[%s1 + $0x40] sm:$0xff]
      %v180 = vld [vmem:[%s1 + $0x48] sm:$0xff]
      %v181 = vld [vmem:[%s1 + $0x50] sm:$0xff]
      %v182 = vld [vmem:[%s1 + $0x58] sm:$0xff]
      %v183 = vld [vmem:[%s1 + $0x60] sm:$0xff]
      %v184 = vld [vmem:[%s1 + $0x68] sm:$0xff]
      %v185 = vld [vmem:[%s1 + $0x70] sm:$0xff]
      %v186 = vld [vmem:[%s1 + $0x78] sm:$0xff]
      %v187 = vld [vmem:[%s1 + $0x80] sm:$0xff]
      %v188 = vld [vmem:[%s1 + $0x88] sm:$0xff]
      %v189 = vld [vmem:[%s1 + $0x90] sm:$0xff]
      %v190 = vld [vmem:[%s1 + $0x98] sm:$0xff]
      %v191 = vld [vmem:[%s1 + $0xa0] sm:$0xff]
      %v192 = vld [vmem:[%s1 + $0xa8] sm:$0xff]
      %v193 = vld [vmem:[%s1 + $0xb0] sm:$0x3]
      %v194 = vld [vmem:[%s1 + $0xb8] sm:$0x3]
      %v195 = vld [vmem:[%s165] sm:$0xff]
      %v196 = vld [vmem:[%s165 + $0x8] sm:$0xff]
      %v197 = vld [vmem:[%s165 + $0x10] sm:$0xff]
      %v198 = vld [vmem:[%s165 + $0x18] sm:$0xff]
      %v199 = vld [vmem:[%s165 + $0x20] sm:$0xff]
      %v200 = vld [vmem:[%s165 + $0x28] sm:$0xff]
      %v201 = vld [vmem:[%s165 + $0x30] sm:$0xff]
      %v202 = vld [vmem:[%s165 + $0x38] sm:$0xff]
      %v203 = vld [vmem:[%s165 + $0x40] sm:$0xff]
      %v204 = vld [vmem:[%s165 + $0x48] sm:$0xff]
      %v205 = vld [vmem:[%s165 + $0x50] sm:$0xff]
      %v206 = vld [vmem:[%s165 + $0x58] sm:$0xff]
      %v207 = vld [vmem:[%s165 + $0x60] sm:$0xff]
      %v208 = vld [vmem:[%s165 + $0x68] sm:$0xff]
      %v209 = vld [vmem:[%s165 + $0x70] sm:$0xff]
      %v210 = vld [vmem:[%s165 + $0x78] sm:$0xff]
      %v211 = vld [vmem:[%s165 + $0x80] sm:$0xff]
      %v212 = vld [vmem:[%s165 + $0x88] sm:$0xff]
      %v213 = vld [vmem:[%s165 + $0x90] sm:$0xff]
      %v214 = vld [vmem:[%s165 + $0x98] sm:$0xff]
      %v215 = vld [vmem:[%s165 + $0xa0] sm:$0xff]
      %v216 = vld [vmem:[%s165 + $0xa8] sm:$0xff]
      %v217 = vld [vmem:[%s165 + $0xb0] sm:$0xff]
      %v218 = vld [vmem:[%s165 + $0xb8] sm:$0xff]
      %v219 = vld [vmem:[%s165 + $0xc0] sm:$0xff]
      %v220 = vld [vmem:[%s165 + $0xc8] sm:$0xff]
      %v221 = vld [vmem:[%s165 + $0xd0] sm:$0xff]
      %v222 = vld [vmem:[%s165 + $0xd8] sm:$0xff]
      %v223 = vld [vmem:[%s165 + $0xe0] sm:$0xff]
      %v224 = vld [vmem:[%s165 + $0xe8] sm:$0xff]
      %v225 = vld [vmem:[%s165 + $0xf0] sm:$0xff]
      %v226 = vld [vmem:[%s165 + $0xf8] sm:$0xff]
      %v227 = vld [vmem:[%s165 + $0x100] sm:$0xff]
      %v228 = vld [vmem:[%s165 + $0x108] sm:$0xff]
      %v229 = vld [vmem:[%s165 + $0x110] sm:$0xff]
      %v230 = vld [vmem:[%s165 + $0x118] sm:$0xff]
      %v231 = vld [vmem:[%s165 + $0x120] sm:$0xff]
      %v232 = vld [vmem:[%s165 + $0x128] sm:$0xff]
      %v233 = vld [vmem:[%s165 + $0x130] sm:$0xff]
      %v234 = vld [vmem:[%s165 + $0x138] sm:$0xff]
      %v235 = vld [vmem:[%s165 + $0x140] sm:$0xff]
      %v236 = vld [vmem:[%s165 + $0x148] sm:$0xff]
      %v237 = vld [vmem:[%s165 + $0x150] sm:$0xff]
      %v238 = vld [vmem:[%s165 + $0x158] sm:$0xff]
      %v239 = vld [vmem:[%s165 + $0x160] sm:$0xff]
      %v240 = vld [vmem:[%s165 + $0x168] sm:$0xff]
      %v241 = vld [vmem:[%s165 + $0x170] sm:$0xff]
      %v242 = vld [vmem:[%s165 + $0x178] sm:$0xff]
      %v243 = vld [vmem:[%s165 + $0x180] sm:$0xf]
      %v244 = vld [vmem:[%s165 + $0x188] sm:$0xf]
      %v245 = vld [vmem:[%s2] sm:$0xff]
      %v246 = vld [vmem:[%s2 + $0x8] sm:$0xff]
      %v247 = vld [vmem:[%s2 + $0x10] sm:$0xff]
      %v248 = vld [vmem:[%s2 + $0x18] sm:$0xff]
      %v249 = vld [vmem:[%s2 + $0x20] sm:$0xff]
      %v250 = vld [vmem:[%s2 + $0x28] sm:$0xff]
      %v251 = vld [vmem:[%s2 + $0x30] sm:$0xff]
      %v252 = vld [vmem:[%s2 + $0x38] sm:$0xff]
      %v253 = vld [vmem:[%s2 + $0x40] sm:$0xff]
      %v254 = vld [vmem:[%s2 + $0x48] sm:$0xff]
      %v255 = vld [vmem:[%s2 + $0x50] sm:$0xff]
      %v256 = vld [vmem:[%s2 + $0x58] sm:$0x3]
      %258 = vset.pattern.permute.xlu0 0
      %259 = vperm.xlu0 %258, %v245
      %v260 = vpop.permute.xlu0 %259
      %263 = vset.pattern.permute.xlu0 0
      %264 = vperm.xlu0 %263, %v246
      %v265 = vpop.permute.xlu0 %264
      %268 = vset.pattern.permute.xlu0 0
      %269 = vperm.xlu0 %268, %v247
      %v270 = vpop.permute.xlu0 %269
      %273 = vset.pattern.permute.xlu0 0
      %274 = vperm.xlu0 %273, %v248
      %v275 = vpop.permute.xlu0 %274
      %278 = vset.pattern.permute.xlu0 0
      %279 = vperm.xlu0 %278, %v249
      %v280 = vpop.permute.xlu0 %279
      %283 = vset.pattern.permute.xlu0 0
      %284 = vperm.xlu0 %283, %v250
      %v285 = vpop.permute.xlu0 %284
      %288 = vset.pattern.permute.xlu0 0
      %289 = vperm.xlu0 %288, %v251
      %v290 = vpop.permute.xlu0 %289
      %293 = vset.pattern.permute.xlu0 0
      %294 = vperm.xlu0 %293, %v252
      %v295 = vpop.permute.xlu0 %294
      %298 = vset.pattern.permute.xlu0 0
      %299 = vperm.xlu0 %298, %v253
      %v300 = vpop.permute.xlu0 %299
      %303 = vset.pattern.permute.xlu0 0
      %304 = vperm.xlu0 %303, %v254
      %v305 = vpop.permute.xlu0 %304
      %308 = vset.pattern.permute.xlu0 0
      %309 = vperm.xlu0 %308, %v255
      %v310 = vpop.permute.xlu0 %309
      %313 = vset.pattern.permute.xlu0 0
      %314 = vperm.xlu0 %313, %v256
      %v315 = vpop.permute.xlu0 %314
      %vm317 = vcmask 556032
      %v319 = vsel %vm317, %v172, 0
      %v322 = vsel %vm317, %v174, 0
      %v325 = vsel %vm317, %v176, 0
      %v328 = vsel %vm317, %v178, 0
      %v331 = vsel %vm317, %v180, 0
      %v334 = vsel %vm317, %v182, 0
      %v337 = vsel %vm317, %v184, 0
      %v340 = vsel %vm317, %v186, 0
      %v343 = vsel %vm317, %v188, 0
      %v346 = vsel %vm317, %v190, 0
      %v349 = vsel %vm317, %v192, 0
      %v352 = vsel %vm317, %v194, 0
      %vm354 = vcmask 1043456
      %v356 = vsel %vm354, %v243, 0
      %v359 = vsel %vm354, %v244, 0
      %361 = vmatprep.subr.mxu0 %v196
      %362 = vmatpush1.msra.mxu0 %v195
      %363 = vmatprep.subr.mxu0 %v198
      %364 = vmatpush1.msra.mxu0 %v197
      %365 = vmatprep.subr.mxu0 %v200
      %366 = vmatpush1.msra.mxu0 %v199
      %367 = vmatprep.subr.mxu0 %v202
      %368 = vmatpush1.msra.mxu0 %v201
      %369 = vmatprep.subr.mxu0 %v204
      %370 = vmatpush1.msra.mxu0 %v203
      %371 = vmatprep.subr.mxu0 %v206
      %372 = vmatpush1.msra.mxu0 %v205
      %373 = vmatprep.subr.mxu0 %v208
      %374 = vmatpush1.msra.mxu0 %v207
      %375 = vmatprep.subr.mxu0 %v210
      %376 = vmatpush1.msra.mxu0 %v209
      %377 = vmatprep.subr.mxu0 %v212
      %378 = vmatpush1.msra.mxu0 %v211
      %379 = vmatprep.subr.mxu0 %v214
      %380 = vmatpush1.msra.mxu0 %v213
      %381 = vmatprep.subr.mxu0 %v216
      %382 = vmatpush1.msra.mxu0 %v215
      %383 = vmatprep.subr.mxu0 %v218
      %384 = vmatpush1.msra.mxu0 %v217
      %385 = vmatprep.subr.mxu0 %v220
      %386 = vmatpush1.msra.mxu0 %v219
      %387 = vmatprep.subr.mxu0 %v222
      %388 = vmatpush1.msra.mxu0 %v221
      %389 = vmatprep.subr.mxu0 %v224
      %390 = vmatpush1.msra.mxu0 %v223
      %391 = vmatprep.subr.mxu0 %v226
      %392 = vmatpush1.msra.mxu0 %v225
      %393 = vmatprep.subr.mxu0 %v228
      %394 = vmatpush1.msra.mxu0 %v227
      %395 = vmatprep.subr.mxu0 %v230
      %396 = vmatpush1.msra.mxu0 %v229
      %397 = vmatprep.subr.mxu0 %v232
      %398 = vmatpush1.msra.mxu0 %v231
      %399 = vmatprep.subr.mxu0 %v234
      %400 = vmatpush1.msra.mxu0 %v233
      %401 = vmatprep.subr.mxu0 %v236
      %402 = vmatpush1.msra.mxu0 %v235
      %403 = vmatprep.subr.mxu0 %v238
      %404 = vmatpush1.msra.mxu0 %v237
      %405 = vmatprep.subr.mxu0 %v240
      %406 = vmatpush1.msra.mxu0 %v239
      %407 = vmatprep.subr.mxu0 %v242
      %408 = vmatpush1.msra.mxu0 %v241
      %409 = vmatprep.subr.mxu0 %v359
      %410 = vmatpush1.msra.mxu0 %v356
      %411 = vmatprep.subr.mxu0 0.0
      %412 = vmatpush1.msra.mxu0 0.0
      %413 = vmatprep.subr.mxu0 0.0
      %414 = vmatpush1.msra.mxu0 0.0
      %415 = vmatprep.subr.mxu0 0.0
      %416 = vmatpush1.msra.mxu0 0.0
      %417 = vmatprep.subr.mxu0 0.0
      %418 = vmatpush1.msra.mxu0 0.0
      %419 = vmatprep.subr.mxu0 0.0
      %420 = vmatpush1.msra.mxu0 0.0
      %421 = vmatprep.subr.mxu0 0.0
      %422 = vmatpush1.msra.mxu0 0.0
      %423 = vmatprep.subr.mxu0 0.0
      %424 = vmatpush1.msra.mxu0 0.0
      %425 = vmatprep.mubr.f32.mxu0 %v319
      %426 = vmatmul.mubr.f32.gmra.mrb[0].mxu0 %v171
      %v427 = vpop.f32.mrb[0].mxu0
      %v428 = vadd.f32 %v260, %v427
      %v429 = vpop.f32.mrb[0].mxu0
      %v430 = vadd.f32 %v260, %v429
      %431 = vmatprep.mubr.f32.mxu0 %v322
      %432 = vmatmul.mubr.f32.gmra.mrb[0].mxu0 %v173
      %v433 = vpop.f32.mrb[0].mxu0
      %v434 = vadd.f32 %v265, %v433
      %v435 = vpop.f32.mrb[0].mxu0
      %v436 = vadd.f32 %v265, %v435
      %437 = vmatprep.mubr.f32.mxu0 %v325
      %438 = vmatmul.mubr.f32.gmra.mrb[0].mxu0 %v175
      %v439 = vpop.f32.mrb[0].mxu0
      %v440 = vadd.f32 %v270, %v439
      %v441 = vpop.f32.mrb[0].mxu0
      %v442 = vadd.f32 %v270, %v441
      %443 = vmatprep.mubr.f32.mxu0 %v328
      %444 = vmatmul.mubr.f32.gmra.mrb[0].mxu0 %v177
      %v445 = vpop.f32.mrb[0].mxu0
      %v446 = vadd.f32 %v275, %v445
      %v447 = vpop.f32.mrb[0].mxu0
      %v448 = vadd.f32 %v275, %v447
      %449 = vmatprep.mubr.f32.mxu0 %v331
      %450 = vmatmul.mubr.f32.gmra.mrb[0].mxu0 %v179
      %v451 = vpop.f32.mrb[0].mxu0
      %v452 = vadd.f32 %v280, %v451
      %v453 = vpop.f32.mrb[0].mxu0
      %v454 = vadd.f32 %v280, %v453
      %455 = vmatprep.mubr.f32.mxu0 %v334
      %456 = vmatmul.mubr.f32.gmra.mrb[0].mxu0 %v181
      %v457 = vpop.f32.mrb[0].mxu0
      %v458 = vadd.f32 %v285, %v457
      %v459 = vpop.f32.mrb[0].mxu0
      %v460 = vadd.f32 %v285, %v459
      %461 = vmatprep.mubr.f32.mxu0 %v337
      %462 = vmatmul.mubr.f32.gmra.mrb[0].mxu0 %v183
      %v463 = vpop.f32.mrb[0].mxu0
      %v464 = vadd.f32 %v290, %v463
      %v465 = vpop.f32.mrb[0].mxu0
      %v466 = vadd.f32 %v290, %v465
      %467 = vmatprep.mubr.f32.mxu0 %v340
      %468 = vmatmul.mubr.f32.gmra.mrb[0].mxu0 %v185
      %v469 = vpop.f32.mrb[0].mxu0
      %v470 = vadd.f32 %v295, %v469
      %v471 = vpop.f32.mrb[0].mxu0
      %v472 = vadd.f32 %v295, %v471
      %473 = vmatprep.mubr.f32.mxu0 %v343
      %474 = vmatmul.mubr.f32.gmra.mrb[0].mxu0 %v187
      %v475 = vpop.f32.mrb[0].mxu0
      %v476 = vadd.f32 %v300, %v475
      %v477 = vpop.f32.mrb[0].mxu0
      %v478 = vadd.f32 %v300, %v477
      %479 = vmatprep.mubr.f32.mxu0 %v346
      %480 = vmatmul.mubr.f32.gmra.mrb[0].mxu0 %v189
      %v481 = vpop.f32.mrb[0].mxu0
      %v482 = vadd.f32 %v305, %v481
      %v483 = vpop.f32.mrb[0].mxu0
      %v484 = vadd.f32 %v305, %v483
      %485 = vmatprep.mubr.f32.mxu0 %v349
      %486 = vmatmul.mubr.f32.gmra.mrb[0].mxu0 %v191
      %v487 = vpop.f32.mrb[0].mxu0
      %v488 = vadd.f32 %v310, %v487
      %v489 = vpop.f32.mrb[0].mxu0
      %v490 = vadd.f32 %v310, %v489
      %491 = vmatprep.mubr.f32.mxu0 %v352
      %492 = vmatmul.mubr.f32.gmra.mrb[0].mxu0 %v193
      %v493 = vpop.f32.mrb[0].mxu0
      %v494 = vadd.f32 %v315, %v493
      %v495 = vpop.f32.mrb[0].mxu0
      %v496 = vadd.f32 %v315, %v495
      %497 = vdwg.mxu0
      %v498 = vmax.f32 %v428, 0.0
      %v499 = vmax.f32 %v430, 0.0
      %v500 = vmax.f32 %v434, 0.0
      %v501 = vmax.f32 %v436, 0.0
      %v502 = vmax.f32 %v440, 0.0
      %v503 = vmax.f32 %v442, 0.0
      %v504 = vmax.f32 %v446, 0.0
      %v505 = vmax.f32 %v448, 0.0
      %v506 = vmax.f32 %v452, 0.0
      %v507 = vmax.f32 %v454, 0.0
      %v508 = vmax.f32 %v458, 0.0
      %v509 = vmax.f32 %v460, 0.0
      %v510 = vmax.f32 %v464, 0.0
      %v511 = vmax.f32 %v466, 0.0
      %v512 = vmax.f32 %v470, 0.0
      %v513 = vmax.f32 %v472, 0.0
      %v514 = vmax.f32 %v476, 0.0
      %v515 = vmax.f32 %v478, 0.0
      %v516 = vmax.f32 %v482, 0.0
      %v517 = vmax.f32 %v484, 0.0
      %v518 = vmax.f32 %v488, 0.0
      %v519 = vmax.f32 %v490, 0.0
      %v520 = vmax.f32 %v494, 0.0
      %v521 = vmax.f32 %v496, 0.0
      %522 = vst [vmem:[%s170] sm:$0xff] %v498
      %523 = vst [vmem:[%s170 + $0x8] sm:$0xff] %v499
      %524 = vst [vmem:[%s170 + $0x10] sm:$0xff] %v500
      %525 = vst [vmem:[%s170 + $0x18] sm:$0xff] %v501
      %526 = vst [vmem:[%s170 + $0x20] sm:$0xff] %v502
      %527 = vst [vmem:[%s170 + $0x28] sm:$0xff] %v503
      %528 = vst [vmem:[%s170 + $0x30] sm:$0xff] %v504
      %529 = vst [vmem:[%s170 + $0x38] sm:$0xff] %v505
      %530 = vst [vmem:[%s170 + $0x40] sm:$0xff] %v506
      %531 = vst [vmem:[%s170 + $0x48] sm:$0xff] %v507
      %532 = vst [vmem:[%s170 + $0x50] sm:$0xff] %v508
      %533 = vst [vmem:[%s170 + $0x58] sm:$0xff] %v509
      %534 = vst [vmem:[%s170 + $0x60] sm:$0xff] %v510
      %535 = vst [vmem:[%s170 + $0x68] sm:$0xff] %v511
      %536 = vst [vmem:[%s170 + $0x70] sm:$0xff] %v512
      %537 = vst [vmem:[%s170 + $0x78] sm:$0xff] %v513
      %538 = vst [vmem:[%s170 + $0x80] sm:$0xff] %v514
      %539 = vst [vmem:[%s170 + $0x88] sm:$0xff] %v515
      %540 = vst [vmem:[%s170 + $0x90] sm:$0xff] %v516
      %541 = vst [vmem:[%s170 + $0x98] sm:$0xff] %v517
      %542 = vst [vmem:[%s170 + $0xa0] sm:$0xff] %v518
      %543 = vst [vmem:[%s170 + $0xa8] sm:$0xff] %v519
      %544 = vst [vmem:[%s170 + $0xb0] sm:$0x3] %v520
      %545 = vst [vmem:[%s170 + $0xb8] sm:$0x3] %v521
      %p546 = scmp.lt.s32.totalorder %s14, 1
      %s547 = scalar_select %p546, %s14, 1
      %s548 = smul.addr %s547, 24
      %s549 = smul.addr %s548, 8
      %s550 = scalar_lea.vmem %s3, %s549
      // Predicated region
      $region33: #{tpu_custom_call.1} parent=31 // pred_check
        %p551 = pneg %p100
      $region34: #{tpu_custom_call.1} parent=31 // pred_check_branch
        %553 = sbr.rel (%p551) target = $region36
      $region35: #{tpu_custom_call.1} parent=31 // pred_region
        _
      $region36: #{tpu_custom_call.1} parent=31 // pred_fallthru
        _
    $region32: #{tpu_custom_call.1} parent=5 // pred_fallthru
      _
    %p554 = scmp.le.s32.totalorder 2, %s9
    // Predicated region
    $region37: #{tpu_custom_call.1} parent=5 // pred_check
      %p555 = pneg %p554
    $region38: #{tpu_custom_call.1} parent=5 // pred_check_branch
      %557 = sbr.rel (%p555) target = $region40
    $region39: #{tpu_custom_call.1} parent=5 // pred_region
      %s558 = ssub.s32 %s9, 2
      // Predicated region
      $region41: #{tpu_custom_call.1} parent=39 // pred_check
        %p559 = pneg %p106
      $region42: #{tpu_custom_call.1} parent=39 // pred_check_branch
        %561 = sbr.rel (%p559) target = $region44
      $region43: #{tpu_custom_call.1} parent=39 // pred_region
        %p562 = scmp.lt.s32.totalorder %s15, 1
        %s563 = scalar_select %p562, %s15, 1
        %s564 = smul.addr %s563, 24
        %s565 = smul.addr %s564, 8
        %s566 = scalar_lea.vmem %s3, %s565
      $region44: #{tpu_custom_call.1} parent=39 // pred_fallthru
        _
    $region40: #{tpu_custom_call.1} parent=5 // pred_fallthru
      _
  $region6: #{tpu_custom_call.1} parent=0 // loop_footer
    %s13 = sadd.s32 1, %s9
  $region7: #{tpu_custom_call.1} parent=0 // loop_footer_branch
    %8 = sbr.rel target = $region3
  $region8: #{tpu_custom_call.1} parent=0 // loop_exit
    _

</llo_original>
